<compile_context>
chip_gen: v6e
topology: v6e:2x2x1
jax: 0.10.0
libtpu: 0.0.40
codegen_flags: <defaults>
</compile_context>

<pallas_src>
import functools

import jax
import jax.numpy as jnp
from jax.experimental import pallas as pl
from jax.experimental.pallas import tpu as pltpu


# Row layout of the packed per-neuron parameter block ([_P_ROWS, N] f32).
_P_THR, _P_MDECAY, _P_ADECAY, _P_RSCALED, _P_VRESET, _P_BADAPT, _P_TREFR = range(7)
_P_ROWS = 8  # padded to a full sublane group


# ----------------------------------------------------------------------------
# Shared LIF update (operates on loaded values; p is the [8, tn] param tile).
# ----------------------------------------------------------------------------
def _lif_step(i_in, v, refr, adapt, p, dt):
    thr      = p[_P_THR:_P_THR + 1, :]          # [1, tn] -> broadcasts over batch
    m_decay  = p[_P_MDECAY:_P_MDECAY + 1, :]
    a_decay  = p[_P_ADECAY:_P_ADECAY + 1, :]
    r_scaled = p[_P_RSCALED:_P_RSCALED + 1, :]
    v_reset  = p[_P_VRESET:_P_VRESET + 1, :]
    b_adapt  = p[_P_BADAPT:_P_BADAPT + 1, :]
    t_refr   = p[_P_TREFR:_P_TREFR + 1, :]

    non_refractory = refr <= 0.0
    # V' = V * exp(-dt/tau_m) + R * (I - I_adapt) * (1 - exp(-dt/tau_m))
    integrated = v * m_decay + (i_in - adapt) * r_scaled
    new_v = jnp.where(non_refractory, integrated, v)

    spikes = (new_v >= thr) & non_refractory
    new_v = jnp.where(spikes, v_reset, new_v)

    new_refr = jnp.where(spikes, t_refr, jnp.maximum(refr - dt, 0.0))

    spikes_f = spikes.astype(jnp.float32)
    new_adapt = adapt * a_decay + spikes_f * b_adapt
    return new_v, spikes_f, new_refr, new_adapt


# ----------------------------------------------------------------------------
# Kernels
# ----------------------------------------------------------------------------
def lif_step_kernel(i_ref, v_ref, refr_ref, adapt_ref, p_ref,
                    v_out_ref, spike_out_ref, refr_out_ref, adapt_out_ref,
                    *, dt: float):
    """One LIF integration step on a [tb, tn] tile."""
    new_v, spikes_f, new_refr, new_adapt = _lif_step(
        i_ref[...], v_ref[...], refr_ref[...], adapt_ref[...], p_ref[...], dt)
    v_out_ref[...] = new_v
    spike_out_ref[...] = spikes_f.astype(spike_out_ref.dtype)
    refr_out_ref[...] = new_refr
    adapt_out_ref[...] = new_adapt


def lif_fused_kernel(i_ref, v0_ref, refr0_ref, adapt0_ref, p_ref,
                     spike_out_ref, v_out_ref, refr_out_ref, adapt_out_ref,
                     v_sc, refr_sc, adapt_sc, *, dt: float):
    """T fused LIF steps; state lives in VMEM scratch across the T grid axis."""
    t = pl.program_id(2)

    @pl.when(t == 0)
    def _():
        v_sc[...] = v0_ref[...]
        refr_sc[...] = refr0_ref[...]
        adapt_sc[...] = adapt0_ref[...]

    new_v, spikes_f, new_refr, new_adapt = _lif_step(
        i_ref[0], v_sc[...], refr_sc[...], adapt_sc[...], p_ref[...], dt)

    v_sc[...] = new_v
    refr_sc[...] = new_refr
    adapt_sc[...] = new_adapt
    spike_out_ref[0] = spikes_f.astype(spike_out_ref.dtype)

    @pl.when(t == pl.num_programs(2) - 1)
    def _():
        v_out_ref[...] = new_v
        refr_out_ref[...] = new_refr
        adapt_out_ref[...] = new_adapt


# ----------------------------------------------------------------------------
# Tiling / VMEM helpers
# ----------------------------------------------------------------------------
def _round_down(x, m):
    return (x // m) * m


def _vmem_capacity_bytes():
    try:
        info = pltpu.get_tpu_info()
        cap = getattr(info, "vmem_capacity_bytes", None)
        if cap:
            return int(cap)
    except Exception:
        pass
    return 128 << 20  # v5e / v6e default; v7x reports 64 MiB when queryable


def _pick_tiles(B, N, *, stream_bytes_per_elem, spike_itemsize,
                block_batch=None, block_neurons=None):
    cap = _vmem_capacity_bytes()
    # Double-buffered working-set budget: half of physical VMEM, capped.
    budget = min(max(cap // 2, 24 << 20), 96 << 20)

    # Neuron (lane) tile: keep lane-dense (>=128 and a multiple of 128), or full N.
    if block_neurons is not None:
        tn = min(int(block_neurons), N)
    else:
        tn = min(N, 2048)
    if tn < N:
        tn = min(N, max(128, _round_down(tn, 128)))

    # Batch (sublane) tile. Sub-32-bit spike outputs need (32,128)/(16,128) tiles.
    tb_align = 32 if spike_itemsize == 1 else (16 if spike_itemsize == 2 else 8)
    if block_batch is not None:
        tb = min(int(block_batch), B)
    else:
        per_row = 2 * stream_bytes_per_elem * tn
        tb = min(B, max(tb_align, budget // max(per_row, 1)))
    if tb < B:
        tb = min(B, max(tb_align, _round_down(tb, tb_align)))

    # v7x megacore: make sure at least one parallel axis has >= 2 programs.
    if pl.cdiv(B, tb) * pl.cdiv(N, tn) == 1 and B >= 2 * tb_align:
        tb = max(tb_align, _round_down((B + 1) // 2, tb_align))

    return tb, tn


def _vmem_limit(tb, tn, stream_bytes_per_elem, scratch_bytes=0):
    cap = _vmem_capacity_bytes()
    need = (2 * (tb * tn * stream_bytes_per_elem + _P_ROWS * tn * 4)
            + scratch_bytes + (4 << 20))
    upper = min(cap - (8 << 20), 100 << 20)
    return int(max(32 << 20, min(need, upper)))


# ----------------------------------------------------------------------------
# Parameter packing
# ----------------------------------------------------------------------------
def _threshold_row(threshold, N):
    thr = jnp.asarray(threshold, jnp.float32)
    if thr.ndim == 1:
        return thr.reshape(N)
    # Contract: LIFNeuron never modifies the threshold, so every row of a
    # [B, N] threshold equals the per-neuron spike_threshold; one row carries
    # all of the information and avoids a full B x N HBM read per step.
    return thr[0].reshape(N)


def _pack_params(threshold_row, params, dt, N):
    """Pack threshold + derived per-neuron constants into one [8, N] f32 block."""
    f32 = jnp.float32
    tau_m = jnp.asarray(params["tau_membrane"], f32).reshape(N)
    tau_a = jnp.asarray(params["tau_adaptation"], f32).reshape(N)
    m_decay = jnp.exp(-dt / tau_m)
    a_decay = jnp.exp(-dt / tau_a)
    r_scaled = jnp.asarray(params["resistance"], f32).reshape(N) * (1.0 - m_decay)
    rows = [
        jnp.asarray(threshold_row, f32).reshape(N),
        m_decay,
        a_decay,
        r_scaled,
        jnp.asarray(params["reset_potential"], f32).reshape(N),
        jnp.asarray(params["adaptation_strength"], f32).reshape(N),
        jnp.asarray(params["refractory_period"], f32).reshape(N),
        jnp.zeros((N,), f32),                      # pad to 8 sublanes
    ]
    return jnp.stack(rows, axis=0)                 # [8, N]


# ----------------------------------------------------------------------------
# Wrappers
# ----------------------------------------------------------------------------
def lif_forward(input_current, state, params, dt=0.1, *,
                block_batch=None, block_neurons=None,
                spike_dtype=jnp.float32):
    """One LIF integration step (matches LIFNeuron.forward).

    input_current: [B, N].  state: dict with membrane_potential [B,N],
    threshold ([1,N], [N] or [B,N]), refractory_time [B,N],
    adaptation_current [B,N].  params: dict of per-neuron parameters [N].
    """
    B, N = input_current.shape
    f32 = jnp.float32
    dt = float(dt)

    i_in = jnp.asarray(input_current, f32)
    v = jnp.asarray(state["membrane_potential"], f32)
    refr = jnp.asarray(state["refractory_time"], f32)
    adapt = jnp.asarray(state["adaptation_current"], f32)
    p = _pack_params(_threshold_row(state["threshold"], N), params, dt, N)

    spike_itemsize = jnp.dtype(spike_dtype).itemsize
    stream_bytes = 4 * 4 + 3 * 4 + spike_itemsize       # 4 f32 in, 3 f32 out, spikes out
    tb, tn = _pick_tiles(B, N, stream_bytes_per_elem=stream_bytes,
                         spike_itemsize=spike_itemsize,
                         block_batch=block_batch, block_neurons=block_neurons)

    # Grid order (neuron-tiles, batch-tiles): the packed param tile keeps the
    # same block index across the inner batch axis -> fetched once per n-tile.
    grid = (pl.cdiv(N, tn), pl.cdiv(B, tb))
    state_spec = pl.BlockSpec((tb, tn), lambda n, b: (b, n))
    param_spec = pl.BlockSpec((_P_ROWS, tn), lambda n, b: (0, n))

    out_shapes = (
        jax.ShapeDtypeStruct((B, N), f32),           # membrane_potential
        jax.ShapeDtypeStruct((B, N), spike_dtype),   # spike_output
        jax.ShapeDtypeStruct((B, N), f32),           # refractory_time
        jax.ShapeDtypeStruct((B, N), f32),           # adaptation_current
    )

    bytes_accessed = int(B * N * stream_bytes + _P_ROWS * N * 4)
    cost = pl.CostEstimate(flops=int(12 * B * N), transcendentals=0,
                           bytes_accessed=bytes_accessed)

    new_v, spikes, new_refr, new_adapt = pl.pallas_call(
        functools.partial(lif_step_kernel, dt=dt),
        out_shape=out_shapes,
        grid_spec=pltpu.PrefetchScalarGridSpec(
            num_scalar_prefetch=0,
            grid=grid,
            in_specs=[state_spec] * 4 + [param_spec],
            out_specs=(state_spec, state_spec, state_spec, state_spec),
        ),
        # In-place state update when the caller donates the old buffers.
        input_output_aliases={1: 0, 2: 2, 3: 3},
        compiler_params=pltpu.CompilerParams(
            dimension_semantics=("parallel", "parallel"),
            vmem_limit_bytes=_vmem_limit(tb, tn, stream_bytes),
        ),
        cost_estimate=cost,
    )(i_in, v, refr, adapt, p)

    return {
        "membrane_potential": new_v,
        "spike_output": spikes,
        "threshold": state["threshold"],   # unchanged, as in the PyTorch module
        "refractory_time": new_refr,
        "adaptation_current": new_adapt,
    }


def lif_forward_fused(input_currents, state, params, dt=0.1, *,
                      block_batch=None, block_neurons=None,
                      spike_dtype=jnp.int8):
    """Run T LIF steps in a single kernel with the state resident in VMEM.

    input_currents: [T, B, N].  Returns (spikes [T, B, N] in `spike_dtype`,
    final_state dict).  Per step only the input current is read from HBM and
    the (narrow-dtype) spikes are written back; the three state tensors are
    read once and written once for the whole sweep.
    """
    T, B, N = input_currents.shape
    f32 = jnp.float32
    dt = float(dt)

    i_in = jnp.asarray(input_currents, f32)
    v = jnp.asarray(state["membrane_potential"], f32)
    refr = jnp.asarray(state["refractory_time"], f32)
    adapt = jnp.asarray(state["adaptation_current"], f32)
    p = _pack_params(_threshold_row(state["threshold"], N), params, dt, N)

    spike_itemsize = jnp.dtype(spike_dtype).itemsize
    # Per-element VMEM streams alive at once: input + spikes + 3 state-in +
    # 3 state-out + 3 f32 scratch (counted conservatively for the tile budget).
    stream_bytes = 4 + spike_itemsize + 6 * 4 + 3 * 4
    tb, tn = _pick_tiles(B, N, stream_bytes_per_elem=stream_bytes,
                         spike_itemsize=spike_itemsize,
                         block_batch=block_batch, block_neurons=block_neurons)

    grid = (pl.cdiv(B, tb), pl.cdiv(N, tn), T)

    step_spec = pl.BlockSpec((1, tb, tn), lambda b, n, t: (t, b, n))   # streamed per t
    state_spec = pl.BlockSpec((tb, tn), lambda b, n, t: (b, n))        # constant over t
    param_spec = pl.BlockSpec((_P_ROWS, tn), lambda b, n, t: (0, n))

    out_shapes = (
        jax.ShapeDtypeStruct((T, B, N), spike_dtype),  # spikes per step
        jax.ShapeDtypeStruct((B, N), f32),             # final membrane potential
        jax.ShapeDtypeStruct((B, N), f32),             # final refractory time
        jax.ShapeDtypeStruct((B, N), f32),             # final adaptation current
    )

    scratch_bytes = 3 * tb * tn * 4
    bytes_accessed = int(T * B * N * (4 + spike_itemsize)
                         + 6 * B * N * 4 + _P_ROWS * N * 4)
    cost = pl.CostEstimate(flops=int(12 * T * B * N), transcendentals=0,
                           bytes_accessed=bytes_accessed)

    spikes, new_v, new_refr, new_adapt = pl.pallas_call(
        functools.partial(lif_fused_kernel, dt=dt),
        out_shape=out_shapes,
        grid_spec=pltpu.PrefetchScalarGridSpec(
            num_scalar_prefetch=0,
            grid=grid,
            in_specs=[step_spec, state_spec, state_spec, state_spec, param_spec],
            out_specs=(step_spec, state_spec, state_spec, state_spec),
            scratch_shapes=[pltpu.VMEM((tb, tn), jnp.float32)] * 3,
        ),
        compiler_params=pltpu.CompilerParams(
            dimension_semantics=("parallel", "parallel", "arbitrary"),
            vmem_limit_bytes=_vmem_limit(tb, tn, stream_bytes, scratch_bytes),
        ),
        cost_estimate=cost,
    )(i_in, v, refr, adapt, p)

    final_state = {
        "membrane_potential": new_v,
        "spike_output": spikes[-1].astype(f32),
        "threshold": state["threshold"],
        "refractory_time": new_refr,
        "adaptation_current": new_adapt,
    }
    return spikes, final_state


# ----------------------------------------------------------------------------
# Module-equivalent init + pure-JAX reference
# ----------------------------------------------------------------------------
def make_params(num_neurons):
    """Deterministic parameter init matching LIFNeuron.__init__."""
    full = lambda v: jnp.full((num_neurons,), v, dtype=jnp.float32)
    return {
        "tau_membrane": full(20.0),
        "tau_adaptation": full(100.0),
        "resistance": full(1.0),
        "rest_potential": full(-70.0),
        "spike_threshold": full(-50.0),
        "reset_potential": full(-80.0),
        "adaptation_strength": full(0.1),
        "refractory_period": full(2.0),
    }


def init_state(params, batch_size, num_neurons):
    """Mirror LIFNeuron.init_state (threshold kept as one per-neuron row)."""
    return {
        "membrane_potential": jnp.broadcast_to(
            params["rest_potential"][None, :], (batch_size, num_neurons)
        ).astype(jnp.float32),
        "spike_output": jnp.zeros((batch_size, num_neurons), jnp.float32),
        "threshold": params["spike_threshold"].astype(jnp.float32).reshape(1, num_neurons),
        "refractory_time": jnp.zeros((batch_size, num_neurons), jnp.float32),
        "adaptation_current": jnp.zeros((batch_size, num_neurons), jnp.float32),
    }


def reference_forward(input_current, state, params, dt=0.1):
    """Pure-JAX reference mirroring the PyTorch forward."""
    non_refractory = state["refractory_time"] <= 0
    m_decay = jnp.exp(-dt / params["tau_membrane"])
    a_decay = jnp.exp(-dt / params["tau_adaptation"])
    total = input_current - state["adaptation_current"]
    new_v = state["membrane_potential"] * m_decay + params["resistance"] * total * (1 - m_decay)
    new_v = jnp.where(non_refractory, new_v, state["membrane_potential"])
    spikes = (new_v >= state["threshold"]) & non_refractory
    new_v = jnp.where(spikes, params["reset_potential"][None, :], new_v)
    new_refr = jnp.where(
        spikes,
        params["refractory_period"][None, :],
        jnp.maximum(state["refractory_time"] - dt, 0.0),
    )
    new_adapt = (state["adaptation_current"] * a_decay
                 + spikes.astype(jnp.float32) * params["adaptation_strength"])
    return new_v, spikes.astype(jnp.float32), new_refr, new_adapt


def _check(new_state, ref):
    ref_v, ref_s, ref_r, ref_a = ref
    assert jnp.allclose(new_state["membrane_potential"], ref_v, atol=1e-3, rtol=1e-5)
    assert jnp.array_equal(new_state["spike_output"].astype(jnp.float32), ref_s)
    assert jnp.allclose(new_state["refractory_time"], ref_r, atol=1e-5)
    assert jnp.allclose(new_state["adaptation_current"], ref_a, atol=1e-5)


if __name__ == "__main__":
    dt = 0.1
    key = jax.random.PRNGKey(0)
    k1, k2, k3, k4 = jax.random.split(key, 4)

    # --- 1) single step, small shape, chained twice (spikes + refractory) ---
    B, N = 4, 128
    params = make_params(N)
    state0 = init_state(params, B, N)
    # Drive strong enough that a good fraction of neurons actually spike.
    inp1 = 8000.0 * jax.random.uniform(k1, (B, N), jnp.float32)
    inp2 = 8000.0 * jax.random.uniform(k2, (B, N), jnp.float32)

    # References computed before the kernel call that consumes the same state
    # (aliased state inputs may be donated / updated in place under jit).
    ref1 = reference_forward(inp1, state0, params, dt=dt)
    s1 = lif_forward(inp1, state0, params, dt=dt)
    jax.tree_util.tree_map(jax.block_until_ready, s1)
    _check(s1, ref1)

    ref2 = reference_forward(inp2, s1, params, dt=dt)
    s2 = lif_forward(inp2, s1, params, dt=dt)
    jax.tree_util.tree_map(jax.block_until_ready, s2)
    _check(s2, ref2)

    # --- 2) single step, multi-tile grid: (8,128)-aligned tiling on both axes ---
    B2, N2 = 16, 256
    params2 = make_params(N2)
    st0 = init_state(params2, B2, N2)
    inp = 8000.0 * jax.random.uniform(k3, (B2, N2), jnp.float32)
    ref3 = reference_forward(inp, st0, params2, dt=dt)
    s3 = lif_forward(inp, st0, params2, dt=dt, block_batch=8, block_neurons=128)
    jax.tree_util.tree_map(jax.block_until_ready, s3)
    _check(s3, ref3)

    # --- 3) fused multi-step kernel: state resident in VMEM, int8 spikes ---
    T, B3, N3 = 6, 32, 256
    params3 = make_params(N3)
    st_fused0 = init_state(params3, B3, N3)
    inps = 8000.0 * jax.random.uniform(k4, (T, B3, N3), jnp.float32)

    ref_state = st_fused0
    ref_spikes = []
    for t in range(T):
        v_r, s_r, r_r, a_r = reference_forward(inps[t], ref_state, params3, dt=dt)
        ref_spikes.append(s_r)
        ref_state = {
            "membrane_potential": v_r,
            "spike_output": s_r,
            "threshold": ref_state["threshold"],
            "refractory_time": r_r,
            "adaptation_current": a_r,
        }
    ref_spikes = jnp.stack(ref_spikes, axis=0)

    spikes, final_state = lif_forward_fused(inps, st_fused0, params3, dt=dt)
    jax.block_until_ready(spikes)
    jax.tree_util.tree_map(jax.block_until_ready, final_state)
    assert spikes.dtype == jnp.dtype(jnp.int8)
    assert jnp.array_equal(spikes.astype(jnp.float32), ref_spikes)
    assert jnp.allclose(final_state["membrane_potential"],
                        ref_state["membrane_potential"], atol=1e-3, rtol=1e-5)
    assert jnp.allclose(final_state["refractory_time"],
                        ref_state["refractory_time"], atol=1e-5)
    assert jnp.allclose(final_state["adaptation_current"],
                        ref_state["adaptation_current"], atol=1e-5)

    print("KERNEL_OK")
</pallas_src>

<mosaic_0001>
module attributes {stable_mosaic.version = 11 : i64} {
  func.func @lif_step_kernel(%arg0: i32, %arg1: i32, %arg2: memref<4x128xf32, #tpu.memory_space<vmem>>, %arg3: memref<4x128xf32, #tpu.memory_space<vmem>>, %arg4: memref<4x128xf32, #tpu.memory_space<vmem>>, %arg5: memref<4x128xf32, #tpu.memory_space<vmem>>, %arg6: memref<8x128xf32, #tpu.memory_space<vmem>>, %arg7: memref<4x128xf32, #tpu.memory_space<vmem>>, %arg8: memref<4x128xf32, #tpu.memory_space<vmem>>, %arg9: memref<4x128xf32, #tpu.memory_space<vmem>>, %arg10: memref<4x128xf32, #tpu.memory_space<vmem>>) attributes {dimension_semantics = [#tpu.dimension_semantics<parallel>, #tpu.dimension_semantics<parallel>], iteration_bounds = array<i64: 1, 1>, scalar_prefetch = 0 : i64, scratch_operands = 0 : i64, tpu.core_type = #tpu.core_type<tc>, window_params = [{transform_indices = @transform_0, window_bounds = array<i64: 4, 128>}, {transform_indices = @transform_1, window_bounds = array<i64: 4, 128>}, {transform_indices = @transform_2, window_bounds = array<i64: 4, 128>}, {transform_indices = @transform_3, window_bounds = array<i64: 4, 128>}, {transform_indices = @transform_4, window_bounds = array<i64: 8, 128>}, {transform_indices = @transform_5, window_bounds = array<i64: 4, 128>}, {transform_indices = @transform_6, window_bounds = array<i64: 4, 128>}, {transform_indices = @transform_7, window_bounds = array<i64: 4, 128>}, {transform_indices = @transform_8, window_bounds = array<i64: 4, 128>}]} {
    %c0 = arith.constant 0 : index
    %c0_0 = arith.constant 0 : index
    %0 = vector.load %arg2[%c0, %c0_0] : memref<4x128xf32, #tpu.memory_space<vmem>>, vector<4x128xf32>
    %c0_1 = arith.constant 0 : index
    %c0_2 = arith.constant 0 : index
    %1 = vector.load %arg3[%c0_1, %c0_2] : memref<4x128xf32, #tpu.memory_space<vmem>>, vector<4x128xf32>
    %c0_3 = arith.constant 0 : index
    %c0_4 = arith.constant 0 : index
    %2 = vector.load %arg4[%c0_3, %c0_4] : memref<4x128xf32, #tpu.memory_space<vmem>>, vector<4x128xf32>
    %c0_5 = arith.constant 0 : index
    %c0_6 = arith.constant 0 : index
    %3 = vector.load %arg5[%c0_5, %c0_6] : memref<4x128xf32, #tpu.memory_space<vmem>>, vector<4x128xf32>
    %c0_7 = arith.constant 0 : index
    %c0_8 = arith.constant 0 : index
    %4 = vector.load %arg6[%c0_7, %c0_8] : memref<8x128xf32, #tpu.memory_space<vmem>>, vector<8x128xf32>
    %5 = vector.extract_strided_slice %4 {offsets = [0, 0], sizes = [1, 128], strides = [1, 1]} : vector<8x128xf32> to vector<1x128xf32>
    %6 = vector.extract_strided_slice %4 {offsets = [1, 0], sizes = [1, 128], strides = [1, 1]} : vector<8x128xf32> to vector<1x128xf32>
    %7 = vector.extract_strided_slice %4 {offsets = [2, 0], sizes = [1, 128], strides = [1, 1]} : vector<8x128xf32> to vector<1x128xf32>
    %8 = vector.extract_strided_slice %4 {offsets = [3, 0], sizes = [1, 128], strides = [1, 1]} : vector<8x128xf32> to vector<1x128xf32>
    %9 = vector.extract_strided_slice %4 {offsets = [4, 0], sizes = [1, 128], strides = [1, 1]} : vector<8x128xf32> to vector<1x128xf32>
    %10 = vector.extract_strided_slice %4 {offsets = [5, 0], sizes = [1, 128], strides = [1, 1]} : vector<8x128xf32> to vector<1x128xf32>
    %11 = vector.extract_strided_slice %4 {offsets = [6, 0], sizes = [1, 128], strides = [1, 1]} : vector<8x128xf32> to vector<1x128xf32>
    %cst = arith.constant 0.000000e+00 : f32
    %12 = vector.broadcast %cst : f32 to vector<4x128xf32>
    %13 = arith.cmpf ole, %2, %12 : vector<4x128xf32>
    %14 = vector.broadcast %6 : vector<1x128xf32> to vector<4x128xf32>
    %15 = arith.mulf %1, %14 : vector<4x128xf32>
    %16 = arith.subf %0, %3 : vector<4x128xf32>
    %17 = vector.broadcast %8 : vector<1x128xf32> to vector<4x128xf32>
    %18 = arith.mulf %16, %17 : vector<4x128xf32>
    %19 = arith.addf %15, %18 : vector<4x128xf32>
    %20 = arith.select %13, %19, %1 : vector<4x128xi1>, vector<4x128xf32>
    %21 = vector.broadcast %5 : vector<1x128xf32> to vector<4x128xf32>
    %22 = arith.cmpf oge, %20, %21 : vector<4x128xf32>
    %23 = arith.andi %22, %13 : vector<4x128xi1>
    %24 = vector.shape_cast %9 : vector<1x128xf32> to vector<1x128xf32>
    %25 = vector.broadcast %24 : vector<1x128xf32> to vector<4x128xf32>
    %26 = arith.select %23, %25, %20 : vector<4x128xi1>, vector<4x128xf32>
    %cst_9 = arith.constant 1.000000e-01 : f32
    %27 = vector.broadcast %cst_9 : f32 to vector<4x128xf32>
    %28 = arith.subf %2, %27 : vector<4x128xf32>
    %cst_10 = arith.constant 0.000000e+00 : f32
    %29 = vector.broadcast %cst_10 : f32 to vector<4x128xf32>
    %30 = arith.maximumf %28, %29 : vector<4x128xf32>
    %31 = vector.shape_cast %11 : vector<1x128xf32> to vector<1x128xf32>
    %32 = vector.broadcast %31 : vector<1x128xf32> to vector<4x128xf32>
    %33 = arith.select %23, %32, %30 : vector<4x128xi1>, vector<4x128xf32>
    %34 = arith.extui %23 : vector<4x128xi1> to vector<4x128xi32>
    %35 = arith.sitofp %34 : vector<4x128xi32> to vector<4x128xf32>
    %36 = vector.broadcast %7 : vector<1x128xf32> to vector<4x128xf32>
    %37 = arith.mulf %3, %36 : vector<4x128xf32>
    %38 = vector.broadcast %10 : vector<1x128xf32> to vector<4x128xf32>
    %39 = arith.mulf %35, %38 : vector<4x128xf32>
    %40 = arith.addf %37, %39 : vector<4x128xf32>
    %c0_11 = arith.constant 0 : index
    %c0_12 = arith.constant 0 : index
    %41 = vector.load %arg7[%c0_11, %c0_12] : memref<4x128xf32, #tpu.memory_space<vmem>>, vector<4x128xf32>
    tpu.vector_store %arg7[%c0_11, %c0_12], %26 {strides = array<i32>} : memref<4x128xf32, #tpu.memory_space<vmem>>, vector<4x128xf32>,
    %c0_13 = arith.constant 0 : index
    %c0_14 = arith.constant 0 : index
    %42 = vector.load %arg8[%c0_13, %c0_14] : memref<4x128xf32, #tpu.memory_space<vmem>>, vector<4x128xf32>
    tpu.vector_store %arg8[%c0_13, %c0_14], %35 {strides = array<i32>} : memref<4x128xf32, #tpu.memory_space<vmem>>, vector<4x128xf32>,
    %c0_15 = arith.constant 0 : index
    %c0_16 = arith.constant 0 : index
    %43 = vector.load %arg9[%c0_15, %c0_16] : memref<4x128xf32, #tpu.memory_space<vmem>>, vector<4x128xf32>
    tpu.vector_store %arg9[%c0_15, %c0_16], %33 {strides = array<i32>} : memref<4x128xf32, #tpu.memory_space<vmem>>, vector<4x128xf32>,
    %c0_17 = arith.constant 0 : index
    %c0_18 = arith.constant 0 : index
    %44 = vector.load %arg10[%c0_17, %c0_18] : memref<4x128xf32, #tpu.memory_space<vmem>>, vector<4x128xf32>
    tpu.vector_store %arg10[%c0_17, %c0_18], %40 {strides = array<i32>} : memref<4x128xf32, #tpu.memory_space<vmem>>, vector<4x128xf32>,
    return
  }
  func.func @transform_0(%arg0: i32, %arg1: i32) -> (i32, i32) {
    %c0_i32 = arith.constant 0 : i32
    return %arg1, %arg0 : i32, i32
  }
  func.func @transform_1(%arg0: i32, %arg1: i32) -> (i32, i32) {
    %c0_i32 = arith.constant 0 : i32
    return %arg1, %arg0 : i32, i32
  }
  func.func @transform_2(%arg0: i32, %arg1: i32) -> (i32, i32) {
    %c0_i32 = arith.constant 0 : i32
    return %arg1, %arg0 : i32, i32
  }
  func.func @transform_3(%arg0: i32, %arg1: i32) -> (i32, i32) {
    %c0_i32 = arith.constant 0 : i32
    return %arg1, %arg0 : i32, i32
  }
  func.func @transform_4(%arg0: i32, %arg1: i32) -> (i32, i32) {
    %c0_i32 = arith.constant 0 : i32
    %c0_i32_0 = arith.constant 0 : i32
    return %c0_i32, %arg0 : i32, i32
  }
  func.func @transform_5(%arg0: i32, %arg1: i32) -> (i32, i32) {
    %c0_i32 = arith.constant 0 : i32
    return %arg1, %arg0 : i32, i32
  }
  func.func @transform_6(%arg0: i32, %arg1: i32) -> (i32, i32) {
    %c0_i32 = arith.constant 0 : i32
    return %arg1, %arg0 : i32, i32
  }
  func.func @transform_7(%arg0: i32, %arg1: i32) -> (i32, i32) {
    %c0_i32 = arith.constant 0 : i32
    return %arg1, %arg0 : i32, i32
  }
  func.func @transform_8(%arg0: i32, %arg1: i32) -> (i32, i32) {
    %c0_i32 = arith.constant 0 : i32
    return %arg1, %arg0 : i32, i32
  }
}

</mosaic_0001>

<llo_original>
// kernel: tpu_custom_call.1
$region0: #{tpu_custom_call.1}
  #allocation0 [shape = 'u32[]', space=smem, size = 0x4, offset = 0x4, fixed_abs, tag = 'smem constant byte address 0x4 - core index']
  #allocation1 [shape = 'u32[144,128]{1,0:T(1,128)}', space=vmem, size = 0x12000, scoped, tag = 'internal scratch']
  %s0 = inlined_call_operand.vmem [shape: f32[4,128], index: 0, kind: input, shape index: {}]
  %s1 = inlined_call_operand.hbm [shape: f32[4,128], index: 1, kind: input, shape index: {}, may-alias: {1,5}]
  %s2 = inlined_call_operand.hbm [shape: f32[4,128], index: 2, kind: input, shape index: {}, may-alias: {2,7}]
  %s3 = inlined_call_operand.hbm [shape: f32[4,128], index: 3, kind: input, shape index: {}, may-alias: {3,8}]
  %s4 = inlined_call_operand.vmem [shape: f32[8,128], index: 4, kind: input, shape index: {}]
  %s5 = inlined_call_operand.hbm [shape: f32[4,128], index: 5, kind: output, shape index: {0}, may-alias: {1,5}]
  %s6 = inlined_call_operand.hbm [shape: f32[4,128], index: 6, kind: output, shape index: {1}]
  %s7 = inlined_call_operand.hbm [shape: f32[4,128], index: 7, kind: output, shape index: {2}, may-alias: {2,7}]
  %s8 = inlined_call_operand.hbm [shape: f32[4,128], index: 8, kind: output, shape index: {3}, may-alias: {3,8}]
  %9 = xla_tuple %s5, %s6, %s7, %s8
  %s10 = sld [smem:[#allocation0]]
  $region66: #{tpu_custom_call.1} parent=0
    _
  %s12 = ssub.s32 1, %s10
  %s13 = scalar_select 0, %s12, %s10
  $region1: #{tpu_custom_call.1} parent=0
    #allocation2 [shape = 'u8[2048]{0}', space=vmem, size = 0x800, scoped, tag = 'input window, operand 1, single buffered']
    #allocation3 [shape = 's32[1]{0}', space=sflag, size = 0x4, scoped, tag = 'scoped memory for tpu_custom_call.1']
    #allocation4 [shape = 's32[1]{0}', space=sflag, size = 0x4, scoped, tag = 'scoped memory for tpu_custom_call.1']
    #allocation5 [shape = 'u8[2048]{0}', space=vmem, size = 0x800, scoped, tag = 'input window, operand 2, single buffered']
    #allocation6 [shape = 's32[1]{0}', space=sflag, size = 0x4, scoped, tag = 'scoped memory for tpu_custom_call.1']
    #allocation7 [shape = 'u8[2048]{0}', space=vmem, size = 0x800, scoped, tag = 'input window, operand 3, single buffered']
    #allocation8 [shape = 'u8[2048]{0}', space=vmem, size = 0x800, scoped, tag = 'output window, operand 0, single buffered']
    #allocation9 [shape = 'u8[2048]{0}', space=vmem, size = 0x800, scoped, tag = 'output window, operand 1, single buffered']
    #allocation10 [shape = 's32[1]{0}', space=sflag, size = 0x4, scoped, tag = 'scoped memory for tpu_custom_call.1']
    #allocation11 [shape = 'u8[2048]{0}', space=vmem, size = 0x800, scoped, tag = 'output window, operand 2, single buffered']
    #allocation12 [shape = 'u8[2048]{0}', space=vmem, size = 0x800, scoped, tag = 'output window, operand 3, single buffered']
    #allocation13 [shape = 's32[1]{0}', space=sflag, size = 0x4, scoped, tag = 'scoped memory for tpu_custom_call.1']
    %14 = vsyncpa [#allocation3], 0
    %15 = vsyncpa [#allocation6], 0
    %16 = vsyncpa [#allocation4], 0
    %17 = vsyncpa [#allocation10], 0
    %18 = vsyncpa [#allocation13], 0
    // Predicated region
    $region2: #{tpu_custom_call.1} parent=1 // pred_check
      _
    $region3: #{tpu_custom_call.1} parent=1 // pred_check_branch
      %20 = sbr.rel (0) target = $region5
    $region4: #{tpu_custom_call.1} parent=1 // pred_region
      _
    $region5: #{tpu_custom_call.1} parent=1 // pred_fallthru
      _
    // Predicated region
    $region6: #{tpu_custom_call.1} parent=1 // pred_check
      _
    $region7: #{tpu_custom_call.1} parent=1 // pred_check_branch
      %22 = sbr.rel (0) target = $region9
    $region8: #{tpu_custom_call.1} parent=1 // pred_region
      %s24 = ssub.s32 64, 64
      %25 = vsyncadd [#allocation3], %s24
      %s27 = sshll.u32 [#allocation2], 4
      %s28 = int_to_ptr.vmem [resolvable:$true] %s27
      %30 = dma.hbm_to_vmem [thread:$0]  %s1, 64, %s28, [#allocation3]
    $region9: #{tpu_custom_call.1} parent=1 // pred_fallthru
      _
    // Predicated region
    $region10: #{tpu_custom_call.1} parent=1 // pred_check
      _
    $region11: #{tpu_custom_call.1} parent=1 // pred_check_branch
      %32 = sbr.rel (0) target = $region13
    $region12: #{tpu_custom_call.1} parent=1 // pred_region
      %s34 = ssub.s32 64, 64
      %35 = vsyncadd [#allocation6], %s34
      %s37 = sshll.u32 [#allocation5], 4
      %s38 = int_to_ptr.vmem [resolvable:$true] %s37
      %40 = dma.hbm_to_vmem [thread:$0]  %s2, 64, %s38, [#allocation6]
    $region13: #{tpu_custom_call.1} parent=1 // pred_fallthru
      _
    // Predicated region
    $region14: #{tpu_custom_call.1} parent=1 // pred_check
      _
    $region15: #{tpu_custom_call.1} parent=1 // pred_check_branch
      %42 = sbr.rel (0) target = $region17
    $region16: #{tpu_custom_call.1} parent=1 // pred_region
      %s44 = ssub.s32 64, 64
      %45 = vsyncadd [#allocation6], %s44
      %s47 = sshll.u32 [#allocation7], 4
      %s48 = int_to_ptr.vmem [resolvable:$true] %s47
      %50 = dma.hbm_to_vmem [thread:$0]  %s3, 64, %s48, [#allocation6]
    $region17: #{tpu_custom_call.1} parent=1 // pred_fallthru
      _
    // Predicated region
    $region18: #{tpu_custom_call.1} parent=1 // pred_check
      _
    $region19: #{tpu_custom_call.1} parent=1 // pred_check_branch
      %52 = sbr.rel (0) target = $region21
    $region20: #{tpu_custom_call.1} parent=1 // pred_region
      _
    $region21: #{tpu_custom_call.1} parent=1 // pred_fallthru
      _
    // Predicated region
    $region22: #{tpu_custom_call.1} parent=1 // pred_check
      _
    $region23: #{tpu_custom_call.1} parent=1 // pred_check_branch
      %54 = sbr.rel (0) target = $region25
    $region24: #{tpu_custom_call.1} parent=1 // pred_region
      %55 = dma.done [#allocation3], 64
    $region25: #{tpu_custom_call.1} parent=1 // pred_fallthru
      _
    // Predicated region
    $region26: #{tpu_custom_call.1} parent=1 // pred_check
      _
    $region27: #{tpu_custom_call.1} parent=1 // pred_check_branch
      %57 = sbr.rel (0) target = $region29
    $region28: #{tpu_custom_call.1} parent=1 // pred_region
      %58 = dma.done [#allocation6], 64
    $region29: #{tpu_custom_call.1} parent=1 // pred_fallthru
      _
    // Predicated region
    $region30: #{tpu_custom_call.1} parent=1 // pred_check
      _
    $region31: #{tpu_custom_call.1} parent=1 // pred_check_branch
      %60 = sbr.rel (0) target = $region33
    $region32: #{tpu_custom_call.1} parent=1 // pred_region
      %61 = dma.done [#allocation6], 64
    $region33: #{tpu_custom_call.1} parent=1 // pred_fallthru
      _
    %v62 = vld [vmem:[%s0] sm:$0xf]
    %v63 = vld [vmem:[#allocation2] sm:$0xf]
    %v64 = vld [vmem:[#allocation5] sm:$0xf]
    %v65 = vld [vmem:[#allocation7] sm:$0xf]
    %v66 = vld [vmem:[%s4] sm:$0xff]
    %vm67 = vcmp.le.f32.partialorder %v64, 0.0
    %v68 = vlaneseq
    %v69 = vshrl.u32 %v68, 7
    %v70 = vsub.s32 1, %v69
    %v71 = vrot.slane %v66, %v70
    %v72 = vmul.f32 %v63, %v71
    %v73 = vsub.f32 %v62, %v65
    %v74 = vlaneseq
    %v75 = vshrl.u32 %v74, 7
    %v76 = vsub.s32 3, %v75
    %v77 = vrot.slane %v66, %v76
    %v78 = vmul.f32 %v73, %v77
    %v79 = vadd.f32 %v72, %v78
    %v80 = vsel %vm67, %v79, %v63
    %v81 = vlaneseq
    %v82 = vshrl.u32 %v81, 7
    %v83 = vsub.s32 0, %v82
    %v84 = vrot.slane %v66, %v83
    %vm85 = vcmp.ge.f32.partialorder %v80, %v84
    %vm86 = vmand %vm85, %vm67
    %v87 = vlaneseq
    %v88 = vshrl.u32 %v87, 7
    %v89 = vsub.s32 4, %v88
    %v90 = vrot.slane %v66, %v89
    %v91 = vsel %vm86, %v90, %v80
    %v92 = vsub.f32 %v64, 0.1
    %v93 = vmax.f32 %v92, 0.0
    %v94 = vlaneseq
    %v95 = vshrl.u32 %v94, 7
    %v96 = vsub.s32 6, %v95
    %v97 = vrot.slane %v66, %v96
    %v98 = vsel %vm86, %v97, %v93
    %v99 = vsel %vm86, 1, 0
    %v100 = vcvt.s32.f32 %v99
    %v101 = vlaneseq
    %v102 = vshrl.u32 %v101, 7
    %v103 = vsub.s32 2, %v102
    %v104 = vrot.slane %v66, %v103
    %v105 = vmul.f32 %v65, %v104
    %v106 = vlaneseq
    %v107 = vshrl.u32 %v106, 7
    %v108 = vsub.s32 5, %v107
    %v109 = vrot.slane %v66, %v108
    %v110 = vmul.f32 %v100, %v109
    %v111 = vadd.f32 %v105, %v110
    %112 = vst [vmem:[#allocation8] sm:$0xf] %v91
    %113 = vst [vmem:[#allocation9] sm:$0xf] %v100
    %114 = vst [vmem:[#allocation11] sm:$0xf] %v98
    %115 = vst [vmem:[#allocation12] sm:$0xf] %v111
    // Predicated region
    $region34: #{tpu_custom_call.1} parent=1 // pred_check
      _
    $region35: #{tpu_custom_call.1} parent=1 // pred_check_branch
      %117 = sbr.rel (0) target = $region37
    $region36: #{tpu_custom_call.1} parent=1 // pred_region
      %s119 = ssub.s32 64, 64
      %120 = vsyncadd [#allocation4], %s119
      %s122 = sshll.u32 [#allocation8], 4
      %s123 = int_to_ptr.vmem [resolvable:$true] %s122
      %125 = dma.vmem_to_hbm [thread:$0]  %s123, 64, %s5, [#allocation4]
    $region37: #{tpu_custom_call.1} parent=1 // pred_fallthru
      _
    // Predicated region
    $region38: #{tpu_custom_call.1} parent=1 // pred_check
      _
    $region39: #{tpu_custom_call.1} parent=1 // pred_check_branch
      %127 = sbr.rel (0) target = $region41
    $region40: #{tpu_custom_call.1} parent=1 // pred_region
      %s129 = ssub.s32 64, 64
      %130 = vsyncadd [#allocation10], %s129
      %s132 = sshll.u32 [#allocation9], 4
      %s133 = int_to_ptr.vmem [resolvable:$true] %s132
      %135 = dma.vmem_to_hbm [thread:$0]  %s133, 64, %s6, [#allocation10]
    $region41: #{tpu_custom_call.1} parent=1 // pred_fallthru
      _
    // Predicated region
    $region42: #{tpu_custom_call.1} parent=1 // pred_check
      _
    $region43: #{tpu_custom_call.1} parent=1 // pred_check_branch
      %137 = sbr.rel (0) target = $region45
    $region44: #{tpu_custom_call.1} parent=1 // pred_region
      %s139 = ssub.s32 64, 64
      %140 = vsyncadd [#allocation10], %s139
      %s142 = sshll.u32 [#allocation11], 4
      %s143 = int_to_ptr.vmem [resolvable:$true] %s142
      %145 = dma.vmem_to_hbm [thread:$0]  %s143, 64, %s7, [#allocation10]
    $region45: #{tpu_custom_call.1} parent=1 // pred_fallthru
      _
    // Predicated region
    $region46: #{tpu_custom_call.1} parent=1 // pred_check
      _
    $region47: #{tpu_custom_call.1} parent=1 // pred_check_branch
      %147 = sbr.rel (0) target = $region49
    $region48: #{tpu_custom_call.1} parent=1 // pred_region
      %s149 = ssub.s32 64, 64
      %150 = vsyncadd [#allocation13], %s149
      %s152 = sshll.u32 [#allocation12], 4
      %s153 = int_to_ptr.vmem [resolvable:$true] %s152
      %155 = dma.vmem_to_hbm [thread:$0]  %s153, 64, %s8, [#allocation13]
    $region49: #{tpu_custom_call.1} parent=1 // pred_fallthru
      _
    // Predicated region
    $region50: #{tpu_custom_call.1} parent=1 // pred_check
      _
    $region51: #{tpu_custom_call.1} parent=1 // pred_check_branch
      %157 = sbr.rel (0) target = $region53
    $region52: #{tpu_custom_call.1} parent=1 // pred_region
      %158 = dma.done [#allocation4], 64
    $region53: #{tpu_custom_call.1} parent=1 // pred_fallthru
      _
    // Predicated region
    $region54: #{tpu_custom_call.1} parent=1 // pred_check
      _
    $region55: #{tpu_custom_call.1} parent=1 // pred_check_branch
      %160 = sbr.rel (0) target = $region57
    $region56: #{tpu_custom_call.1} parent=1 // pred_region
      %161 = dma.done [#allocation10], 64
    $region57: #{tpu_custom_call.1} parent=1 // pred_fallthru
      _
    // Predicated region
    $region58: #{tpu_custom_call.1} parent=1 // pred_check
      _
    $region59: #{tpu_custom_call.1} parent=1 // pred_check_branch
      %163 = sbr.rel (0) target = $region61
    $region60: #{tpu_custom_call.1} parent=1 // pred_region
      %164 = dma.done [#allocation10], 64
    $region61: #{tpu_custom_call.1} parent=1 // pred_fallthru
      _
    // Predicated region
    $region62: #{tpu_custom_call.1} parent=1 // pred_check
      _
    $region63: #{tpu_custom_call.1} parent=1 // pred_check_branch
      %166 = sbr.rel (0) target = $region65
    $region64: #{tpu_custom_call.1} parent=1 // pred_region
      %167 = dma.done [#allocation13], 64
    $region65: #{tpu_custom_call.1} parent=1 // pred_fallthru
      _
    %168 = vsyncpa [#allocation3], 1
    %169 = vsyncpa [#allocation6], 1
    %170 = vsyncpa [#allocation4], 1
    %171 = vsyncpa [#allocation10], 1
    %172 = vsyncpa [#allocation13], 1

</llo_original>
